<compile_context>
chip_gen: v5e
topology: v5e:2x2
jax: 0.10.0
libtpu: 0.0.40
codegen_flags: <defaults>
</compile_context>

<pallas_src>
import functools

import jax
import jax.numpy as jnp
from jax import lax
from jax.experimental import pallas as pl
from jax.experimental.pallas import tpu as pltpu

LEAKY_SLOPE = 0.01            # nn.LeakyReLU() default
GN_EPS = 1e-5                 # nn.GroupNorm default
VMEM_LIMIT = 64 * 1024 * 1024


def _pick_tile(n, target):
    """Largest multiple-of-8 tile <= target that divides n; falls back to the full extent."""
    if n <= target:
        return n
    start = target - (target % 8)
    for t in range(start, 7, -8):
        if n % t == 0:
            return t
    return n


# ----------------------------------------------------------------------------
# Kernel 1: Conv1d (k=3, stride=1, pad=1), optional groups, fused GroupNorm +
#           LeakyReLU + (conv-input add) + (residual add) epilogue.
#           One merged (T, Cin) x (Cin, 3*Cout) MXU matmul per (group); tap halo
#           handled with pltpu.roll + edge masks (no jnp.pad / concatenate).
# ----------------------------------------------------------------------------
def _conv1d_k3_kernel(*refs, groups, fuse_gn, gn_groups, apply_leaky,
                      has_extra, has_residual, add_input):
    it = iter(refs)
    x_ref = next(it)
    extra_ref = next(it) if has_extra else None
    w_ref = next(it)
    b_ref = next(it)
    gamma_ref = next(it) if fuse_gn else None
    beta_ref = next(it) if fuse_gn else None
    res_ref = next(it) if has_residual else None
    o_ref = next(it)

    x = x_ref[...].astype(jnp.float32)                 # (T, Cin)  conv input
    if has_extra:                                      # e.g. r = r_fwd + r_bwd
        x = x + extra_ref[...].astype(jnp.float32)
    T = x.shape[0]
    b = b_ref[...].astype(jnp.float32)                 # (1, Cout)

    gamma = gamma_ref[...].astype(jnp.float32) if fuse_gn else None
    beta = beta_ref[...].astype(jnp.float32) if fuse_gn else None
    res = res_ref[...].astype(jnp.float32) if has_residual else None

    def taps(xg, wm):
        # xg: (T, cin_g) f32; wm: (cin_g, 3*cout_g) bf16 with tap k in columns [k*cout:(k+1)*cout]
        cout = wm.shape[1] // 3
        y = jnp.dot(xg.astype(jnp.bfloat16), wm,
                    preferred_element_type=jnp.float32)            # (T, 3*cout)
        y0, y1, y2 = y[:, :cout], y[:, cout:2 * cout], y[:, 2 * cout:]
        tid = lax.broadcasted_iota(jnp.int32, (T, cout), 0)
        # out[t] = x[t-1] @ w0 + x[t] @ w1 + x[t+1] @ w2 ; zero halo at the edges.
        y0s = jnp.where(tid > 0, pltpu.roll(y0, 1, 0), 0.0)         # y0s[t] = y0[t-1]
        y2s = jnp.where(tid < T - 1, pltpu.roll(y2, T - 1, 0), 0.0)  # y2s[t] = y2[t+1]
        return y1 + y0s + y2s

    def finalize(ag, sl):
        if fuse_gn:
            mean = jnp.mean(ag, keepdims=True)                      # biased stats per (group, T)
            var = jnp.mean(jnp.square(ag - mean), keepdims=True)
            ag = (ag - mean) * lax.rsqrt(var + GN_EPS) * gamma[:, sl] + beta[:, sl]
        if apply_leaky:
            ag = jnp.where(ag >= 0, ag, LEAKY_SLOPE * ag)
        if add_input:                                               # + r  (conv input)
            ag = ag + x[:, sl]
        if has_residual:                                            # + residual (e.g. block input)
            ag = ag + res[:, sl]
        return ag.astype(o_ref.dtype)

    if groups == 1:
        acc = taps(x, w_ref[...]) + b                               # (T, Cout)
        if fuse_gn:
            cg = acc.shape[1] // gn_groups
            for g in range(gn_groups):                              # static small loop
                sl = slice(g * cg, (g + 1) * cg)
                o_ref[:, sl] = finalize(acc[:, sl], sl)
        else:
            o_ref[...] = finalize(acc, slice(None))
    else:
        # grouped conv: w_ref is (G, Cg, 3*Cg); GN groups coincide with conv groups.
        cg = w_ref.shape[1]
        for g in range(groups):
            sl = slice(g * cg, (g + 1) * cg)
            ag = taps(x[:, sl], w_ref[g]) + b[:, sl]
            o_ref[:, sl] = finalize(ag, sl)


def _merge_taps_dense(w):
    # (3, Cin, Cout) -> (Cin, 3*Cout); tap k in columns [k*Cout:(k+1)*Cout]
    kk, cin, cout = w.shape
    return jnp.transpose(w, (1, 0, 2)).reshape(cin, kk * cout)


def _merge_taps_grouped(w):
    # (3, G, Cg, Cg) -> (G, Cg, 3*Cg)
    kk, g, cgi, cgo = w.shape
    return jnp.transpose(w, (1, 2, 0, 3)).reshape(g, cgi, kk * cgo)


def conv1d_k3(x, w, b, *, groups=1, gn_gamma=None, gn_beta=None, gn_groups=None,
              apply_leaky=False, extra_in=None, residual=None, add_input=False):
    # x: (B, T, Cin) channels-last.
    B, T, Cin = x.shape
    if groups == 1:
        Cout = w.shape[2]
        w_m = _merge_taps_dense(w).astype(jnp.bfloat16)
        w_spec = pl.BlockSpec((Cin, 3 * Cout), lambda i: (0, 0))
    else:
        G, cg = w.shape[1], w.shape[3]
        Cout = G * cg
        assert gn_gamma is None or gn_groups == groups
        w_m = _merge_taps_grouped(w).astype(jnp.bfloat16)
        w_spec = pl.BlockSpec((G, cg, 3 * cg), lambda i: (0, 0, 0))

    fuse_gn = gn_gamma is not None
    has_extra = extra_in is not None
    has_res = residual is not None

    kernel = functools.partial(
        _conv1d_k3_kernel, groups=groups, fuse_gn=fuse_gn, gn_groups=gn_groups,
        apply_leaky=apply_leaky, has_extra=has_extra, has_residual=has_res,
        add_input=add_input)

    in_specs = [pl.BlockSpec((None, T, Cin), lambda i: (i, 0, 0))]
    args = [x]
    if has_extra:
        in_specs.append(pl.BlockSpec((None, T, Cin), lambda i: (i, 0, 0)))
        args.append(extra_in)
    in_specs += [w_spec, pl.BlockSpec((1, Cout), lambda i: (0, 0))]
    args += [w_m, b.reshape(1, Cout)]
    if fuse_gn:
        in_specs += [pl.BlockSpec((1, Cout), lambda i: (0, 0)),
                     pl.BlockSpec((1, Cout), lambda i: (0, 0))]
        args += [gn_gamma.reshape(1, Cout), gn_beta.reshape(1, Cout)]
    if has_res:
        in_specs.append(pl.BlockSpec((None, T, Cout), lambda i: (i, 0, 0)))
        args.append(residual)

    return pl.pallas_call(
        kernel,
        out_shape=jax.ShapeDtypeStruct((B, T, Cout), x.dtype),
        grid=(B,),
        in_specs=in_specs,
        out_specs=pl.BlockSpec((None, T, Cout), lambda i: (i, 0, 0)),
        compiler_params=pltpu.CompilerParams(
            dimension_semantics=("parallel",),
            vmem_limit_bytes=VMEM_LIMIT),
    )(*args)


# ----------------------------------------------------------------------------
# Kernel 2: Bidirectional GRU, both directions in ONE grid program per T-chunk.
#   PyTorch gate order (r, z, n):
#     r = s(gi_r + h Whr + bhr); z = s(gi_z + h Whz + bhz)
#     n = tanh(gi_n + r*(h Whn + bhn)); h' = (1-z)*n + z*h
#   gi = x @ Wih + bih is computed per chunk in the prologue (no HBM intermediate).
#   The backward direction reads chunks in reverse via its index_map and walks the
#   in-chunk loop backwards; hidden states are carried in a VMEM scratch.
# ----------------------------------------------------------------------------
def _gru_kernel(xf_ref, xb_ref, wih_ref, whh_ref, bih_ref, bhh_ref, h0_ref,
                of_ref, ob_ref,
                h_scr, gif_scr, gib_scr, of_scr, ob_scr):
    B, tc, C = xf_ref.shape

    @pl.when(pl.program_id(0) == 0)
    def _init():
        h_scr[0] = h0_ref[0].astype(jnp.float32)
        h_scr[1] = h0_ref[1].astype(jnp.float32)

    wih_f, wih_b = wih_ref[0], wih_ref[1]                 # (C, 3C) bf16
    whh_f, whh_b = whh_ref[0], whh_ref[1]
    bih_f = bih_ref[0].astype(jnp.float32)                # (1, 3C)
    bih_b = bih_ref[1].astype(jnp.float32)
    bhh_f = bhh_ref[0].astype(jnp.float32)
    bhh_b = bhh_ref[1].astype(jnp.float32)

    # -- per-chunk input projection (hoisted off the serial recurrence) --------
    # stored time-major (tc, B, 3C) so the loop can index the leading time axis.
    for b in range(B):
        xfb = xf_ref[b].astype(jnp.bfloat16)              # (tc, C)
        xbb = xb_ref[b].astype(jnp.bfloat16)
        gif_scr[:, b, :] = jnp.dot(xfb, wih_f, preferred_element_type=jnp.float32) + bih_f
        gib_scr[:, b, :] = jnp.dot(xbb, wih_b, preferred_element_type=jnp.float32) + bih_b

    def step(i, carry):
        h_f, h_b = carry
        tf = i
        tb = tc - 1 - i
        gif = gif_scr[tf]                                 # (B, 3C)
        gib = gib_scr[tb]
        ghf = jnp.dot(h_f.astype(jnp.bfloat16), whh_f,
                      preferred_element_type=jnp.float32) + bhh_f
        ghb = jnp.dot(h_b.astype(jnp.bfloat16), whh_b,
                      preferred_element_type=jnp.float32) + bhh_b
        rf = jax.nn.sigmoid(gif[:, :C] + ghf[:, :C])
        zf = jax.nn.sigmoid(gif[:, C:2 * C] + ghf[:, C:2 * C])
        nf = jnp.tanh(gif[:, 2 * C:] + rf * ghf[:, 2 * C:])
        h_f_new = (1.0 - zf) * nf + zf * h_f
        rb = jax.nn.sigmoid(gib[:, :C] + ghb[:, :C])
        zb = jax.nn.sigmoid(gib[:, C:2 * C] + ghb[:, C:2 * C])
        nb = jnp.tanh(gib[:, 2 * C:] + rb * ghb[:, 2 * C:])
        h_b_new = (1.0 - zb) * nb + zb * h_b
        of_scr[tf] = h_f_new
        ob_scr[tb] = h_b_new
        return (h_f_new, h_b_new)

    h_f_fin, h_b_fin = lax.fori_loop(0, tc, step, (h_scr[0], h_scr[1]), unroll=2)
    h_scr[0] = h_f_fin
    h_scr[1] = h_b_fin

    # -- scatter the chunk outputs back to the batch-major output blocks -------
    for b in range(B):
        of_ref[b] = of_scr[:, b, :].astype(of_ref.dtype)
        ob_ref[b] = ob_scr[:, b, :].astype(ob_ref.dtype)


def gru_bidirectional(x_btc, p, h0):
    # x_btc: (B, T, C) batch-major; p['wih'/'whh']: (2, C, 3C); p['bih'/'bhh']: (2, 1, 3C)
    # h0: (2, B, C).  Returns (r_fwd, r_bwd), each (B, T, C).
    B, T, C = x_btc.shape
    tc = _pick_tile(T, 128)
    nT = T // tc

    wih = p['wih'].astype(jnp.bfloat16)
    whh = p['whh'].astype(jnp.bfloat16)

    r_f, r_b = pl.pallas_call(
        _gru_kernel,
        out_shape=(jax.ShapeDtypeStruct((B, T, C), x_btc.dtype),
                   jax.ShapeDtypeStruct((B, T, C), x_btc.dtype)),
        grid=(nT,),
        in_specs=[
            pl.BlockSpec((B, tc, C), lambda t: (0, t, 0)),             # forward chunks
            pl.BlockSpec((B, tc, C), lambda t: (0, nT - 1 - t, 0)),    # backward chunks (reversed)
            pl.BlockSpec((2, C, 3 * C), lambda t: (0, 0, 0)),          # Wih (bf16)
            pl.BlockSpec((2, C, 3 * C), lambda t: (0, 0, 0)),          # Whh (bf16)
            pl.BlockSpec((2, 1, 3 * C), lambda t: (0, 0, 0)),          # bih
            pl.BlockSpec((2, 1, 3 * C), lambda t: (0, 0, 0)),          # bhh
            pl.BlockSpec((2, B, C), lambda t: (0, 0, 0)),              # h0
        ],
        out_specs=(
            pl.BlockSpec((B, tc, C), lambda t: (0, t, 0)),
            pl.BlockSpec((B, tc, C), lambda t: (0, nT - 1 - t, 0)),
        ),
        scratch_shapes=[
            pltpu.VMEM((2, B, C), jnp.float32),          # hidden carry (fwd, bwd)
            pltpu.VMEM((tc, B, 3 * C), jnp.float32),     # gi forward (time-major)
            pltpu.VMEM((tc, B, 3 * C), jnp.float32),     # gi backward
            pltpu.VMEM((tc, B, C), jnp.float32),         # chunk output forward
            pltpu.VMEM((tc, B, C), jnp.float32),         # chunk output backward
        ],
        compiler_params=pltpu.CompilerParams(
            dimension_semantics=("arbitrary",),
            vmem_limit_bytes=VMEM_LIMIT),
    )(x_btc, x_btc, wih, whh, p['bih'], p['bhh'], h0)
    return r_f, r_b


# ----------------------------------------------------------------------------
# Module wrappers (glue)
# ----------------------------------------------------------------------------
def rc_block_apply(p, x, hidden, num_groups):
    # x: (B, T, C).  out = x + r + leaky(gn(grouped_conv(r))), r = sum of GRU directions.
    # Direction sum + both residual adds are fused into the grouped-conv kernel epilogue.
    r_f, r_b = gru_bidirectional(x, p, hidden)
    return conv1d_k3(r_f, p['conv_w'], p['conv_b'], groups=num_groups,
                     gn_gamma=p['gn_w'], gn_beta=p['gn_b'], gn_groups=num_groups,
                     apply_leaky=True, extra_in=r_b, residual=x, add_input=True)


def body_g_block_apply(p, x, hidden, num_groups, residual=None):
    h = conv1d_k3(x, p['conv_in_w'], p['conv_in_b'],
                  gn_gamma=p['gn_w'], gn_beta=p['gn_b'], gn_groups=num_groups,
                  apply_leaky=True)                                  # conv + GN + leaky fused
    h = rc_block_apply(p['rc'], h, hidden, num_groups)
    return conv1d_k3(h, p['conv_out_w'], p['conv_out_b'], residual=residual)


def _pad_head(w, b, cp):
    # Zero-pad head conv output channels to a lane-dense multiple of 128.
    cout = w.shape[2]
    if cout == cp:
        return w, b
    return (jnp.pad(w, ((0, 0), (0, 0), (0, cp - cout))),
            jnp.pad(b, ((0, cp - cout),)))


def netg_apply(params, z_ncw, z_scale_factors, rng_key):
    # z_ncw: (B, z_dim, T) NCW like PyTorch; returns (B, feat_dim, T * prod(scale_factors))
    num_groups = params['num_groups']
    mfd = params['mfd']
    feat_dim = params['head0_w'].shape[2]
    cp = max(128, ((feat_dim + 127) // 128) * 128)          # lane-dense head channel width

    x = jnp.transpose(z_ncw, (0, 2, 1)).astype(jnp.float32)  # (B, T, z_dim)
    B = x.shape[0]

    keys = jax.random.split(rng_key, 1 + len(z_scale_factors))
    # NOTE: torch's RCBlock draws a fresh N(0,1) hidden state every forward; drawn from the key.
    hidden0 = jax.random.normal(keys[0], (2, B, mfd), jnp.float32)

    x_body = body_g_block_apply(params['block0'], x, hidden0, num_groups)
    h0w, h0b = _pad_head(params['head0_w'], params['head0_b'], cp)
    x_head = conv1d_k3(x_body, h0w, h0b)                    # (B, T, cp); padded cols stay zero

    for i, sf in enumerate(z_scale_factors):
        # TODO(synk): fold the nearest-neighbour upsample into the next conv's input (in-VMEM
        #             repeat / index_map read at t // sf) instead of materializing jnp.repeat.
        x_body_up = jnp.repeat(x_body, sf, axis=1)
        x_head_up = jnp.repeat(x_head, sf, axis=1)
        hidden = jax.random.normal(keys[1 + i], (2, B, mfd), jnp.float32)
        x_body = body_g_block_apply(params['blocks'][i], x_body_up, hidden, num_groups,
                                    residual=x_body_up)      # x_body_up + block(x_body_up) fused
        hw, hb = _pad_head(params['heads_w'][i], params['heads_b'][i], cp)
        x_head = conv1d_k3(x_body, hw, hb, residual=x_head_up)  # x_head_up + head(x_body) fused

    return jnp.transpose(x_head[:, :, :feat_dim], (0, 2, 1))


# ----------------------------------------------------------------------------
# Deterministic synthetic parameter init (shapes follow the PyTorch module;
# weight layouts here are (k, Cin, Cout) / (C, 3C) -- real torch checkpoints
# would need a transpose on load).
# ----------------------------------------------------------------------------
def _conv_params(key, cin, cout, scale=0.1):
    k1, k2 = jax.random.split(key)
    w = scale * jax.random.normal(k1, (3, cin, cout), jnp.float32)
    b = scale * jax.random.normal(k2, (cout,), jnp.float32)
    return w, b


def _grouped_conv_params(key, c, groups, scale=0.1):
    k1, k2 = jax.random.split(key)
    cg = c // groups
    w = scale * jax.random.normal(k1, (3, groups, cg, cg), jnp.float32)
    b = scale * jax.random.normal(k2, (c,), jnp.float32)
    return w, b


def _gru_params(key, c, scale=0.1):
    ks = jax.random.split(key, 4)
    return dict(   # leading axis 0=forward, 1=backward; gate column order (r, z, n)
        wih=scale * jax.random.normal(ks[0], (2, c, 3 * c), jnp.float32),
        whh=scale * jax.random.normal(ks[1], (2, c, 3 * c), jnp.float32),
        bih=scale * jax.random.normal(ks[2], (2, 1, 3 * c), jnp.float32),
        bhh=scale * jax.random.normal(ks[3], (2, 1, 3 * c), jnp.float32),
    )


def _rc_params(key, c, groups):
    k1, k2 = jax.random.split(key)
    p = _gru_params(k1, c)
    cw, cb = _grouped_conv_params(k2, c, groups)
    p.update(conv_w=cw, conv_b=cb,
             gn_w=jnp.ones((c,), jnp.float32), gn_b=jnp.zeros((c,), jnp.float32))
    return p


def _body_params(key, cin, cout, mfd, groups):
    k1, k2, k3 = jax.random.split(key, 3)
    ciw, cib = _conv_params(k1, cin, mfd)
    cow, cob = _conv_params(k3, mfd, cout)
    return dict(conv_in_w=ciw, conv_in_b=cib,
                gn_w=jnp.ones((mfd,), jnp.float32), gn_b=jnp.zeros((mfd,), jnp.float32),
                rc=_rc_params(k2, mfd, groups),
                conv_out_w=cow, conv_out_b=cob)


def init_netg_params(key, feat_dim, z_dim, z_scale_factors, mfd, num_groups):
    # NOTE: the PyTorch module hardcodes mfd=512, num_groups=4; mfd is a parameter here so the
    # synthetic test can run at a small, fast size.
    n = len(z_scale_factors)
    keys = jax.random.split(key, 2 + 2 * n)
    params = dict(mfd=mfd, num_groups=num_groups)
    params['block0'] = _body_params(keys[0], z_dim, mfd, mfd, num_groups)
    params['head0_w'], params['head0_b'] = _conv_params(keys[1], mfd, feat_dim)
    params['blocks'], params['heads_w'], params['heads_b'] = [], [], []
    for i in range(n):
        params['blocks'].append(_body_params(keys[2 + 2 * i], mfd, mfd, mfd, num_groups))
        hw, hb = _conv_params(keys[3 + 2 * i], mfd, feat_dim)
        params['heads_w'].append(hw)
        params['heads_b'].append(hb)
    return params


if __name__ == "__main__":
    key = jax.random.PRNGKey(0)
    k_params, k_z, k_hidden = jax.random.split(key, 3)

    feat_dim, z_dim = 8, 4
    mfd, num_groups = 32, 4          # small stand-in for the hardcoded mfd=512
    z_scale_factors = [2, 2]
    B, T = 2, 8

    params = init_netg_params(k_params, feat_dim, z_dim, z_scale_factors, mfd, num_groups)
    z = jax.random.normal(k_z, (B, z_dim, T), jnp.float32)   # NCW, like the PyTorch module

    out = netg_apply(params, z, z_scale_factors, k_hidden)
    out = jax.block_until_ready(out)

    expected_T = T
    for sf in z_scale_factors:
        expected_T *= sf
    assert out.shape == (B, feat_dim, expected_T), out.shape
    assert jnp.all(jnp.isfinite(out))
    print("KERNEL_OK")
</pallas_src>

<mosaic_0001>
module attributes {stable_mosaic.version = 11 : i64} {
  func.func @_conv1d_k3_kernel(%arg0: i32, %arg1: memref<1x8x4xf32, #tpu.memory_space<vmem>>, %arg2: memref<4x96xbf16, #tpu.memory_space<vmem>>, %arg3: memref<1x32xf32, #tpu.memory_space<vmem>>, %arg4: memref<1x32xf32, #tpu.memory_space<vmem>>, %arg5: memref<1x32xf32, #tpu.memory_space<vmem>>, %arg6: memref<1x8x32xf32, #tpu.memory_space<vmem>>) attributes {dimension_semantics = [#tpu.dimension_semantics<parallel>], iteration_bounds = array<i64: 2>, scalar_prefetch = 0 : i64, scratch_operands = 0 : i64, tpu.core_type = #tpu.core_type<tc>, window_params = [{transform_indices = @transform_0, window_bounds = array<i64: 1, 8, 4>}, {pipeline_mode = #tpu.pipeline_mode<synchronous>, transform_indices = @transform_1, window_bounds = array<i64: 4, 96>}, {pipeline_mode = #tpu.pipeline_mode<synchronous>, transform_indices = @transform_2, window_bounds = array<i64: 1, 32>}, {pipeline_mode = #tpu.pipeline_mode<synchronous>, transform_indices = @transform_3, window_bounds = array<i64: 1, 32>}, {pipeline_mode = #tpu.pipeline_mode<synchronous>, transform_indices = @transform_4, window_bounds = array<i64: 1, 32>}, {transform_indices = @transform_5, window_bounds = array<i64: 1, 8, 32>}]} {
    %c0 = arith.constant 0 : index
    %c0_0 = arith.constant 0 : index
    %c0_1 = arith.constant 0 : index
    %0 = vector.load %arg1[%c0, %c0_0, %c0_1] : memref<1x8x4xf32, #tpu.memory_space<vmem>>, vector<1x8x4xf32>
    %1 = vector.shape_cast %0 : vector<1x8x4xf32> to vector<8x4xf32>
    %c0_2 = arith.constant 0 : index
    %c0_3 = arith.constant 0 : index
    %2 = vector.load %arg3[%c0_2, %c0_3] : memref<1x32xf32, #tpu.memory_space<vmem>>, vector<1x32xf32>
    %c0_4 = arith.constant 0 : index
    %c0_5 = arith.constant 0 : index
    %3 = vector.load %arg4[%c0_4, %c0_5] : memref<1x32xf32, #tpu.memory_space<vmem>>, vector<1x32xf32>
    %c0_6 = arith.constant 0 : index
    %c0_7 = arith.constant 0 : index
    %4 = vector.load %arg5[%c0_6, %c0_7] : memref<1x32xf32, #tpu.memory_space<vmem>>, vector<1x32xf32>
    %c0_8 = arith.constant 0 : index
    %c0_9 = arith.constant 0 : index
    %5 = vector.load %arg2[%c0_8, %c0_9] : memref<4x96xbf16, #tpu.memory_space<vmem>>, vector<4x96xbf16>
    %6 = arith.truncf %1 : vector<8x4xf32> to vector<8x4xbf16>
    %cst = arith.constant dense<0.000000e+00> : vector<8x96xf32>
    %7 = tpu.matmul %6, %5, %cst {dimension_numbers = #tpu.dot_dimension_numbers<[1], [0], [0], [1], [0, 0, 1, 1], [], []>} : vector<8x4xbf16>, vector<4x96xbf16>, vector<8x96xf32> -> vector<8x96xf32>
    %8 = vector.extract_strided_slice %7 {offsets = [0, 0], sizes = [8, 32], strides = [1, 1]} : vector<8x96xf32> to vector<8x32xf32>
    %9 = vector.extract_strided_slice %7 {offsets = [0, 32], sizes = [8, 32], strides = [1, 1]} : vector<8x96xf32> to vector<8x32xf32>
    %10 = vector.extract_strided_slice %7 {offsets = [0, 64], sizes = [8, 32], strides = [1, 1]} : vector<8x96xf32> to vector<8x32xf32>
    %11 = tpu.iota {dimensions = array<i32: 0>} : vector<8x32xi32>
    %c0_i32 = arith.constant 0 : i32
    %12 = vector.broadcast %c0_i32 : i32 to vector<8x32xi32>
    %13 = arith.cmpi sgt, %11, %12 : vector<8x32xi32>
    %c1_i32 = arith.constant 1 : i32
    %14 = tpu.dynamic_rotate %8 by %c1_i32 dim 0 : vector<8x32xf32>, i32 -> vector<8x32xf32>
    %cst_10 = arith.constant 0.000000e+00 : f32
    %15 = vector.broadcast %cst_10 : f32 to vector<8x32xf32>
    %16 = arith.select %13, %14, %15 : vector<8x32xi1>, vector<8x32xf32>
    %c7_i32 = arith.constant 7 : i32
    %17 = vector.broadcast %c7_i32 : i32 to vector<8x32xi32>
    %18 = arith.cmpi slt, %11, %17 : vector<8x32xi32>
    %c7_i32_11 = arith.constant 7 : i32
    %19 = tpu.dynamic_rotate %10 by %c7_i32_11 dim 0 : vector<8x32xf32>, i32 -> vector<8x32xf32>
    %cst_12 = arith.constant 0.000000e+00 : f32
    %20 = vector.broadcast %cst_12 : f32 to vector<8x32xf32>
    %21 = arith.select %18, %19, %20 : vector<8x32xi1>, vector<8x32xf32>
    %22 = arith.addf %9, %16 : vector<8x32xf32>
    %23 = arith.addf %22, %21 : vector<8x32xf32>
    %24 = vector.broadcast %2 : vector<1x32xf32> to vector<8x32xf32>
    %25 = arith.addf %23, %24 : vector<8x32xf32>
    %26 = vector.extract_strided_slice %25 {offsets = [0, 0], sizes = [8, 8], strides = [1, 1]} : vector<8x32xf32> to vector<8x8xf32>
    %27 = vector.shape_cast %26 : vector<8x8xf32> to vector<1x8x8xf32>
    %cst_13 = arith.constant dense<0.000000e+00> : vector<1xf32>
    %28 = vector.multi_reduction <add>, %27, %cst_13 [1, 2] : vector<1x8x8xf32> to vector<1xf32>
    %29 = vector.shape_cast %28 : vector<1xf32> to vector<1x1x1xf32>
    %30 = vector.extract %29[0, 0, 0] : f32 from vector<1x1x1xf32>
    %31 = vector.broadcast %30 : f32 to vector<1x1xf32>
    %cst_14 = arith.constant 6.400000e+01 : f32
    %32 = vector.broadcast %cst_14 : f32 to vector<1x1xf32>
    %33 = arith.divf %31, %32 : vector<1x1xf32>
    %34 = vector.broadcast %33 : vector<1x1xf32> to vector<8x8xf32>
    %35 = arith.subf %26, %34 : vector<8x8xf32>
    %36 = arith.mulf %35, %35 : vector<8x8xf32>
    %37 = vector.shape_cast %36 : vector<8x8xf32> to vector<1x8x8xf32>
    %cst_15 = arith.constant dense<0.000000e+00> : vector<1xf32>
    %38 = vector.multi_reduction <add>, %37, %cst_15 [1, 2] : vector<1x8x8xf32> to vector<1xf32>
    %39 = vector.shape_cast %38 : vector<1xf32> to vector<1x1x1xf32>
    %40 = vector.extract %39[0, 0, 0] : f32 from vector<1x1x1xf32>
    %41 = vector.broadcast %40 : f32 to vector<1x1xf32>
    %cst_16 = arith.constant 6.400000e+01 : f32
    %42 = vector.broadcast %cst_16 : f32 to vector<1x1xf32>
    %43 = arith.divf %41, %42 : vector<1x1xf32>
    %44 = vector.broadcast %33 : vector<1x1xf32> to vector<8x8xf32>
    %45 = arith.subf %26, %44 : vector<8x8xf32>
    %cst_17 = arith.constant 9.99999974E-6 : f32
    %46 = vector.broadcast %cst_17 : f32 to vector<1x1xf32>
    %47 = arith.addf %43, %46 : vector<1x1xf32>
    %48 = math.rsqrt %47 : vector<1x1xf32>
    %49 = vector.broadcast %48 : vector<1x1xf32> to vector<8x8xf32>
    %50 = arith.mulf %45, %49 : vector<8x8xf32>
    %51 = vector.extract_strided_slice %3 {offsets = [0, 0], sizes = [1, 8], strides = [1, 1]} : vector<1x32xf32> to vector<1x8xf32>
    %52 = vector.broadcast %51 : vector<1x8xf32> to vector<8x8xf32>
    %53 = arith.mulf %50, %52 : vector<8x8xf32>
    %54 = vector.extract_strided_slice %4 {offsets = [0, 0], sizes = [1, 8], strides = [1, 1]} : vector<1x32xf32> to vector<1x8xf32>
    %55 = vector.broadcast %54 : vector<1x8xf32> to vector<8x8xf32>
    %56 = arith.addf %53, %55 : vector<8x8xf32>
    %cst_18 = arith.constant 0.000000e+00 : f32
    %57 = vector.broadcast %cst_18 : f32 to vector<8x8xf32>
    %58 = arith.cmpf oge, %56, %57 : vector<8x8xf32>
    %cst_19 = arith.constant 0.00999999977 : f32
    %59 = vector.broadcast %cst_19 : f32 to vector<8x8xf32>
    %60 = arith.mulf %59, %56 : vector<8x8xf32>
    %61 = arith.select %58, %56, %60 : vector<8x8xi1>, vector<8x8xf32>
    %c0_20 = arith.constant 0 : index
    %c0_21 = arith.constant 0 : index
    %c0_22 = arith.constant 0 : index
    %62 = vector.load %arg6[%c0_20, %c0_21, %c0_22] : memref<1x8x32xf32, #tpu.memory_space<vmem>>, vector<1x8x8xf32>
    %63 = vector.shape_cast %62 : vector<1x8x8xf32> to vector<8x8xf32>
    %64 = vector.shape_cast %61 : vector<8x8xf32> to vector<1x8x8xf32>
    tpu.vector_store %arg6[%c0_20, %c0_21, %c0_22], %64 {strides = array<i32>} : memref<1x8x32xf32, #tpu.memory_space<vmem>>, vector<1x8x8xf32>,
    %65 = vector.extract_strided_slice %25 {offsets = [0, 8], sizes = [8, 8], strides = [1, 1]} : vector<8x32xf32> to vector<8x8xf32>
    %66 = vector.shape_cast %65 : vector<8x8xf32> to vector<1x8x8xf32>
    %cst_23 = arith.constant dense<0.000000e+00> : vector<1xf32>
    %67 = vector.multi_reduction <add>, %66, %cst_23 [1, 2] : vector<1x8x8xf32> to vector<1xf32>
    %68 = vector.shape_cast %67 : vector<1xf32> to vector<1x1x1xf32>
    %69 = vector.extract %68[0, 0, 0] : f32 from vector<1x1x1xf32>
    %70 = vector.broadcast %69 : f32 to vector<1x1xf32>
    %cst_24 = arith.constant 6.400000e+01 : f32
    %71 = vector.broadcast %cst_24 : f32 to vector<1x1xf32>
    %72 = arith.divf %70, %71 : vector<1x1xf32>
    %73 = vector.broadcast %72 : vector<1x1xf32> to vector<8x8xf32>
    %74 = arith.subf %65, %73 : vector<8x8xf32>
    %75 = arith.mulf %74, %74 : vector<8x8xf32>
    %76 = vector.shape_cast %75 : vector<8x8xf32> to vector<1x8x8xf32>
    %cst_25 = arith.constant dense<0.000000e+00> : vector<1xf32>
    %77 = vector.multi_reduction <add>, %76, %cst_25 [1, 2] : vector<1x8x8xf32> to vector<1xf32>
    %78 = vector.shape_cast %77 : vector<1xf32> to vector<1x1x1xf32>
    %79 = vector.extract %78[0, 0, 0] : f32 from vector<1x1x1xf32>
    %80 = vector.broadcast %79 : f32 to vector<1x1xf32>
    %cst_26 = arith.constant 6.400000e+01 : f32
    %81 = vector.broadcast %cst_26 : f32 to vector<1x1xf32>
    %82 = arith.divf %80, %81 : vector<1x1xf32>
    %83 = vector.broadcast %72 : vector<1x1xf32> to vector<8x8xf32>
    %84 = arith.subf %65, %83 : vector<8x8xf32>
    %cst_27 = arith.constant 9.99999974E-6 : f32
    %85 = vector.broadcast %cst_27 : f32 to vector<1x1xf32>
    %86 = arith.addf %82, %85 : vector<1x1xf32>
    %87 = math.rsqrt %86 : vector<1x1xf32>
    %88 = vector.broadcast %87 : vector<1x1xf32> to vector<8x8xf32>
    %89 = arith.mulf %84, %88 : vector<8x8xf32>
    %90 = vector.extract_strided_slice %3 {offsets = [0, 8], sizes = [1, 8], strides = [1, 1]} : vector<1x32xf32> to vector<1x8xf32>
    %91 = vector.broadcast %90 : vector<1x8xf32> to vector<8x8xf32>
    %92 = arith.mulf %89, %91 : vector<8x8xf32>
    %93 = vector.extract_strided_slice %4 {offsets = [0, 8], sizes = [1, 8], strides = [1, 1]} : vector<1x32xf32> to vector<1x8xf32>
    %94 = vector.broadcast %93 : vector<1x8xf32> to vector<8x8xf32>
    %95 = arith.addf %92, %94 : vector<8x8xf32>
    %cst_28 = arith.constant 0.000000e+00 : f32
    %96 = vector.broadcast %cst_28 : f32 to vector<8x8xf32>
    %97 = arith.cmpf oge, %95, %96 : vector<8x8xf32>
    %cst_29 = arith.constant 0.00999999977 : f32
    %98 = vector.broadcast %cst_29 : f32 to vector<8x8xf32>
    %99 = arith.mulf %98, %95 : vector<8x8xf32>
    %100 = arith.select %97, %95, %99 : vector<8x8xi1>, vector<8x8xf32>
    %c0_30 = arith.constant 0 : index
    %c0_31 = arith.constant 0 : index
    %c8 = arith.constant 8 : index
    %101 = vector.load %arg6[%c0_30, %c0_31, %c8] : memref<1x8x32xf32, #tpu.memory_space<vmem>>, vector<1x8x8xf32>
    %102 = vector.shape_cast %101 : vector<1x8x8xf32> to vector<8x8xf32>
    %103 = vector.shape_cast %100 : vector<8x8xf32> to vector<1x8x8xf32>
    tpu.vector_store %arg6[%c0_30, %c0_31, %c8], %103 {strides = array<i32>} : memref<1x8x32xf32, #tpu.memory_space<vmem>>, vector<1x8x8xf32>,
    %104 = vector.extract_strided_slice %25 {offsets = [0, 16], sizes = [8, 8], strides = [1, 1]} : vector<8x32xf32> to vector<8x8xf32>
    %105 = vector.shape_cast %104 : vector<8x8xf32> to vector<1x8x8xf32>
    %cst_32 = arith.constant dense<0.000000e+00> : vector<1xf32>
    %106 = vector.multi_reduction <add>, %105, %cst_32 [1, 2] : vector<1x8x8xf32> to vector<1xf32>
    %107 = vector.shape_cast %106 : vector<1xf32> to vector<1x1x1xf32>
    %108 = vector.extract %107[0, 0, 0] : f32 from vector<1x1x1xf32>
    %109 = vector.broadcast %108 : f32 to vector<1x1xf32>
    %cst_33 = arith.constant 6.400000e+01 : f32
    %110 = vector.broadcast %cst_33 : f32 to vector<1x1xf32>
    %111 = arith.divf %109, %110 : vector<1x1xf32>
    %112 = vector.broadcast %111 : vector<1x1xf32> to vector<8x8xf32>
    %113 = arith.subf %104, %112 : vector<8x8xf32>
    %114 = arith.mulf %113, %113 : vector<8x8xf32>
    %115 = vector.shape_cast %114 : vector<8x8xf32> to vector<1x8x8xf32>
    %cst_34 = arith.constant dense<0.000000e+00> : vector<1xf32>
    %116 = vector.multi_reduction <add>, %115, %cst_34 [1, 2] : vector<1x8x8xf32> to vector<1xf32>
    %117 = vector.shape_cast %116 : vector<1xf32> to vector<1x1x1xf32>
    %118 = vector.extract %117[0, 0, 0] : f32 from vector<1x1x1xf32>
    %119 = vector.broadcast %118 : f32 to vector<1x1xf32>
    %cst_35 = arith.constant 6.400000e+01 : f32
    %120 = vector.broadcast %cst_35 : f32 to vector<1x1xf32>
    %121 = arith.divf %119, %120 : vector<1x1xf32>
    %122 = vector.broadcast %111 : vector<1x1xf32> to vector<8x8xf32>
    %123 = arith.subf %104, %122 : vector<8x8xf32>
    %cst_36 = arith.constant 9.99999974E-6 : f32
    %124 = vector.broadcast %cst_36 : f32 to vector<1x1xf32>
    %125 = arith.addf %121, %124 : vector<1x1xf32>
    %126 = math.rsqrt %125 : vector<1x1xf32>
    %127 = vector.broadcast %126 : vector<1x1xf32> to vector<8x8xf32>
    %128 = arith.mulf %123, %127 : vector<8x8xf32>
    %129 = vector.extract_strided_slice %3 {offsets = [0, 16], sizes = [1, 8], strides = [1, 1]} : vector<1x32xf32> to vector<1x8xf32>
    %130 = vector.broadcast %129 : vector<1x8xf32> to vector<8x8xf32>
    %131 = arith.mulf %128, %130 : vector<8x8xf32>
    %132 = vector.extract_strided_slice %4 {offsets = [0, 16], sizes = [1, 8], strides = [1, 1]} : vector<1x32xf32> to vector<1x8xf32>
    %133 = vector.broadcast %132 : vector<1x8xf32> to vector<8x8xf32>
    %134 = arith.addf %131, %133 : vector<8x8xf32>
    %cst_37 = arith.constant 0.000000e+00 : f32
    %135 = vector.broadcast %cst_37 : f32 to vector<8x8xf32>
    %136 = arith.cmpf oge, %134, %135 : vector<8x8xf32>
    %cst_38 = arith.constant 0.00999999977 : f32
    %137 = vector.broadcast %cst_38 : f32 to vector<8x8xf32>
    %138 = arith.mulf %137, %134 : vector<8x8xf32>
    %139 = arith.select %136, %134, %138 : vector<8x8xi1>, vector<8x8xf32>
    %c0_39 = arith.constant 0 : index
    %c0_40 = arith.constant 0 : index
    %c16 = arith.constant 16 : index
    %140 = vector.load %arg6[%c0_39, %c0_40, %c16] : memref<1x8x32xf32, #tpu.memory_space<vmem>>, vector<1x8x8xf32>
    %141 = vector.shape_cast %140 : vector<1x8x8xf32> to vector<8x8xf32>
    %142 = vector.shape_cast %139 : vector<8x8xf32> to vector<1x8x8xf32>
    tpu.vector_store %arg6[%c0_39, %c0_40, %c16], %142 {strides = array<i32>} : memref<1x8x32xf32, #tpu.memory_space<vmem>>, vector<1x8x8xf32>,
    %143 = vector.extract_strided_slice %25 {offsets = [0, 24], sizes = [8, 8], strides = [1, 1]} : vector<8x32xf32> to vector<8x8xf32>
    %144 = vector.shape_cast %143 : vector<8x8xf32> to vector<1x8x8xf32>
    %cst_41 = arith.constant dense<0.000000e+00> : vector<1xf32>
    %145 = vector.multi_reduction <add>, %144, %cst_41 [1, 2] : vector<1x8x8xf32> to vector<1xf32>
    %146 = vector.shape_cast %145 : vector<1xf32> to vector<1x1x1xf32>
    %147 = vector.extract %146[0, 0, 0] : f32 from vector<1x1x1xf32>
    %148 = vector.broadcast %147 : f32 to vector<1x1xf32>
    %cst_42 = arith.constant 6.400000e+01 : f32
    %149 = vector.broadcast %cst_42 : f32 to vector<1x1xf32>
    %150 = arith.divf %148, %149 : vector<1x1xf32>
    %151 = vector.broadcast %150 : vector<1x1xf32> to vector<8x8xf32>
    %152 = arith.subf %143, %151 : vector<8x8xf32>
    %153 = arith.mulf %152, %152 : vector<8x8xf32>
    %154 = vector.shape_cast %153 : vector<8x8xf32> to vector<1x8x8xf32>
    %cst_43 = arith.constant dense<0.000000e+00> : vector<1xf32>
    %155 = vector.multi_reduction <add>, %154, %cst_43 [1, 2] : vector<1x8x8xf32> to vector<1xf32>
    %156 = vector.shape_cast %155 : vector<1xf32> to vector<1x1x1xf32>
    %157 = vector.extract %156[0, 0, 0] : f32 from vector<1x1x1xf32>
    %158 = vector.broadcast %157 : f32 to vector<1x1xf32>
    %cst_44 = arith.constant 6.400000e+01 : f32
    %159 = vector.broadcast %cst_44 : f32 to vector<1x1xf32>
    %160 = arith.divf %158, %159 : vector<1x1xf32>
    %161 = vector.broadcast %150 : vector<1x1xf32> to vector<8x8xf32>
    %162 = arith.subf %143, %161 : vector<8x8xf32>
    %cst_45 = arith.constant 9.99999974E-6 : f32
    %163 = vector.broadcast %cst_45 : f32 to vector<1x1xf32>
    %164 = arith.addf %160, %163 : vector<1x1xf32>
    %165 = math.rsqrt %164 : vector<1x1xf32>
    %166 = vector.broadcast %165 : vector<1x1xf32> to vector<8x8xf32>
    %167 = arith.mulf %162, %166 : vector<8x8xf32>
    %168 = vector.extract_strided_slice %3 {offsets = [0, 24], sizes = [1, 8], strides = [1, 1]} : vector<1x32xf32> to vector<1x8xf32>
    %169 = vector.broadcast %168 : vector<1x8xf32> to vector<8x8xf32>
    %170 = arith.mulf %167, %169 : vector<8x8xf32>
    %171 = vector.extract_strided_slice %4 {offsets = [0, 24], sizes = [1, 8], strides = [1, 1]} : vector<1x32xf32> to vector<1x8xf32>
    %172 = vector.broadcast %171 : vector<1x8xf32> to vector<8x8xf32>
    %173 = arith.addf %170, %172 : vector<8x8xf32>
    %cst_46 = arith.constant 0.000000e+00 : f32
    %174 = vector.broadcast %cst_46 : f32 to vector<8x8xf32>
    %175 = arith.cmpf oge, %173, %174 : vector<8x8xf32>
    %cst_47 = arith.constant 0.00999999977 : f32
    %176 = vector.broadcast %cst_47 : f32 to vector<8x8xf32>
    %177 = arith.mulf %176, %173 : vector<8x8xf32>
    %178 = arith.select %175, %173, %177 : vector<8x8xi1>, vector<8x8xf32>
    %c0_48 = arith.constant 0 : index
    %c0_49 = arith.constant 0 : index
    %c24 = arith.constant 24 : index
    %179 = vector.load %arg6[%c0_48, %c0_49, %c24] : memref<1x8x32xf32, #tpu.memory_space<vmem>>, vector<1x8x8xf32>
    %180 = vector.shape_cast %179 : vector<1x8x8xf32> to vector<8x8xf32>
    %181 = vector.shape_cast %178 : vector<8x8xf32> to vector<1x8x8xf32>
    tpu.vector_store %arg6[%c0_48, %c0_49, %c24], %181 {strides = array<i32>} : memref<1x8x32xf32, #tpu.memory_space<vmem>>, vector<1x8x8xf32>,
    return
  }
  func.func @transform_0(%arg0: i32) -> (i32, i32, i32) {
    %c0_i32 = arith.constant 0 : i32
    %c0_i32_0 = arith.constant 0 : i32
    %c0_i32_1 = arith.constant 0 : i32
    return %arg0, %c0_i32, %c0_i32_0 : i32, i32, i32
  }
  func.func @transform_1(%arg0: i32) -> (i32, i32) {
    %c0_i32 = arith.constant 0 : i32
    %c0_i32_0 = arith.constant 0 : i32
    %c0_i32_1 = arith.constant 0 : i32
    return %c0_i32, %c0_i32_0 : i32, i32
  }
  func.func @transform_2(%arg0: i32) -> (i32, i32) {
    %c0_i32 = arith.constant 0 : i32
    %c0_i32_0 = arith.constant 0 : i32
    %c0_i32_1 = arith.constant 0 : i32
    return %c0_i32, %c0_i32_0 : i32, i32
  }
  func.func @transform_3(%arg0: i32) -> (i32, i32) {
    %c0_i32 = arith.constant 0 : i32
    %c0_i32_0 = arith.constant 0 : i32
    %c0_i32_1 = arith.constant 0 : i32
    return %c0_i32, %c0_i32_0 : i32, i32
  }
  func.func @transform_4(%arg0: i32) -> (i32, i32) {
    %c0_i32 = arith.constant 0 : i32
    %c0_i32_0 = arith.constant 0 : i32
    %c0_i32_1 = arith.constant 0 : i32
    return %c0_i32, %c0_i32_0 : i32, i32
  }
  func.func @transform_5(%arg0: i32) -> (i32, i32, i32) {
    %c0_i32 = arith.constant 0 : i32
    %c0_i32_0 = arith.constant 0 : i32
    %c0_i32_1 = arith.constant 0 : i32
    return %arg0, %c0_i32, %c0_i32_0 : i32, i32, i32
  }
}

</mosaic_0001>

<llo_original>
// kernel: tpu_custom_call.1
$region0: #{tpu_custom_call.1}
  #allocation0 [shape = 'u32[]', space=smem, size = 0x4, offset = 0x4, fixed_abs, tag = 'smem constant byte address 0x4 - core index']
  #allocation1 [shape = 'u32[72,128]{1,0:T(1,128)}', space=vmem, size = 0x9000, scoped, tag = 'internal scratch']
  %s0 = inlined_call_operand.vmem [shape: f32[2,8,4], index: 0, kind: input, shape index: {}]
  %s1 = inlined_call_operand.vmem [shape: bf16[4,96], index: 1, kind: input, shape index: {}]
  %s2 = inlined_call_operand.vmem [shape: f32[1,32], index: 2, kind: input, shape index: {}]
  %s3 = inlined_call_operand.vmem [shape: f32[1,32], index: 3, kind: input, shape index: {}]
  %s4 = inlined_call_operand.vmem [shape: f32[1,32], index: 4, kind: input, shape index: {}]
  %s5 = inlined_call_operand.hbm [shape: f32[2,8,32], index: 5, kind: output, shape index: {}]
  %s6 = sld [smem:[#allocation0]]
  $region53: #{tpu_custom_call.1} parent=0
    _
  %s8 = ssub.s32 1, %s6
  %s9 = scalar_select 0, %s8, %s6
  $region1: #{tpu_custom_call.1} parent=0
    #allocation2 [shape = 'u8[8192]{0}', space=vmem, size = 0x2000, scoped, tag = 'output window, operand 0']
    #allocation3 [shape = 's32[2]{0}', space=sflag, size = 0x8, scoped, tag = 'scoped memory for tpu_custom_call.1']
    %10 = vsyncpa [#allocation3], 0
    %s11 = scalar_lea.sflag [#allocation3], 1
    %12 = vsyncpa %s11, 0
    loop: start=0, step=1, limit=4
    $region2: #{tpu_custom_call.1} parent=1 // loop_pre_header
      _
    $region3: #{tpu_custom_call.1} parent=1 // loop_header
      %s14 = sphi 0, %s18
      %p15 = scmp.ge.s32.totalorder %s14, 4
      %s24 = sphi 0, %s26
      %s27 = sphi 0, %s24
      %s28 = sphi 0, %s27
      %s44 = sphi 0, %s28
      %s48 = sphi 0, %s48
      %s50 = sphi 0, %s48
      %s51 = sphi 0, %s50
      %s65 = sphi 0, %s51
      %s69 = sphi 0, %s69
      %s71 = sphi 0, %s69
      %s72 = sphi 0, %s71
      %s86 = sphi 0, %s72
      %s90 = sphi 0, %s90
      %s92 = sphi 0, %s90
      %s93 = sphi 0, %s92
      %s107 = sphi 0, %s93
      %s111 = sphi 0, %s111
      %s113 = sphi 0, %s111
      %s114 = sphi 0, %s113
      %s128 = sphi 0, %s114
      %s134 = sphi 0, %s136
      %s137 = sphi 0, %s134
      %s138 = sphi 0, %s137
      %s154 = sphi 0, %s138
    $region4: #{tpu_custom_call.1} parent=1 // loop_header_branch
      %17 = sbr.rel (%p15) target = $region8
    $region5: #{tpu_custom_call.1} parent=1 // loop_body
      %s19 = ssub.s32 %s14, 1
      %s20 = ssub.s32 %s14, 2
      %s21 = sadd.s32 %s14, 1
      %s22 = ssub.s32 %s14, %s21
      %p23 = scmp.eq.s32.totalorder %s22, 0
      %s25 = sadd.s32 %s24, 1
      %s26 = scalar_select %p23, %s24, %s25
      %p29 = pneg %p23
      %p30 = scmp.eq.s32.totalorder %s14, 1
      %p31 = por %p29, %p30
      %p32 = scmp.ne.s32.totalorder %s24, %s27
      %p33 = scmp.eq.s32.totalorder %s14, 0
      %p34 = por %p32, %p33
      %p35 = scmp.ne.s32.totalorder %s24, %s27
      %p36 = scmp.eq.s32.totalorder %s19, 1
      %p37 = por %p35, %p36
      %p38 = scmp.ne.s32.totalorder %s27, %s28
      %p39 = scmp.eq.s32.totalorder %s19, 0
      %p40 = por %p38, %p39
      %p41 = scmp.ne.s32.totalorder %s27, %s28
      %p42 = scmp.eq.s32.totalorder %s20, 1
      %p43 = por %p41, %p42
      %p45 = scmp.ne.s32.totalorder %s28, %s44
      %p46 = scmp.eq.s32.totalorder %s20, 0
      %p47 = por %p45, %p46
      %s49 = sadd.s32 %s48, 1
      %p52 = scmp.eq.s32.totalorder %s14, 1
      %p53 = scmp.ne.s32.totalorder %s48, %s50
      %p54 = scmp.eq.s32.totalorder %s14, 0
      %p55 = por %p53, %p54
      %p56 = scmp.ne.s32.totalorder %s48, %s50
      %p57 = scmp.eq.s32.totalorder %s19, 1
      %p58 = por %p56, %p57
      %p59 = scmp.ne.s32.totalorder %s50, %s51
      %p60 = scmp.eq.s32.totalorder %s19, 0
      %p61 = por %p59, %p60
      %p62 = scmp.ne.s32.totalorder %s50, %s51
      %p63 = scmp.eq.s32.totalorder %s20, 1
      %p64 = por %p62, %p63
      %p66 = scmp.ne.s32.totalorder %s51, %s65
      %p67 = scmp.eq.s32.totalorder %s20, 0
      %p68 = por %p66, %p67
      %s70 = sadd.s32 %s69, 1
      %p73 = scmp.eq.s32.totalorder %s14, 1
      %p74 = scmp.ne.s32.totalorder %s69, %s71
      %p75 = scmp.eq.s32.totalorder %s14, 0
      %p76 = por %p74, %p75
      %p77 = scmp.ne.s32.totalorder %s69, %s71
      %p78 = scmp.eq.s32.totalorder %s19, 1
      %p79 = por %p77, %p78
      %p80 = scmp.ne.s32.totalorder %s71, %s72
      %p81 = scmp.eq.s32.totalorder %s19, 0
      %p82 = por %p80, %p81
      %p83 = scmp.ne.s32.totalorder %s71, %s72
      %p84 = scmp.eq.s32.totalorder %s20, 1
      %p85 = por %p83, %p84
      %p87 = scmp.ne.s32.totalorder %s72, %s86
      %p88 = scmp.eq.s32.totalorder %s20, 0
      %p89 = por %p87, %p88
      %s91 = sadd.s32 %s90, 1
      %p94 = scmp.eq.s32.totalorder %s14, 1
      %p95 = scmp.ne.s32.totalorder %s90, %s92
      %p96 = scmp.eq.s32.totalorder %s14, 0
      %p97 = por %p95, %p96
      %p98 = scmp.ne.s32.totalorder %s90, %s92
      %p99 = scmp.eq.s32.totalorder %s19, 1
      %p100 = por %p98, %p99
      %p101 = scmp.ne.s32.totalorder %s92, %s93
      %p102 = scmp.eq.s32.totalorder %s19, 0
      %p103 = por %p101, %p102
      %p104 = scmp.ne.s32.totalorder %s92, %s93
      %p105 = scmp.eq.s32.totalorder %s20, 1
      %p106 = por %p104, %p105
      %p108 = scmp.ne.s32.totalorder %s93, %s107
      %p109 = scmp.eq.s32.totalorder %s20, 0
      %p110 = por %p108, %p109
      %s112 = sadd.s32 %s111, 1
      %p115 = scmp.eq.s32.totalorder %s14, 1
      %p116 = scmp.ne.s32.totalorder %s111, %s113
      %p117 = scmp.eq.s32.totalorder %s14, 0
      %p118 = por %p116, %p117
      %p119 = scmp.ne.s32.totalorder %s111, %s113
      %p120 = scmp.eq.s32.totalorder %s19, 1
      %p121 = por %p119, %p120
      %p122 = scmp.ne.s32.totalorder %s113, %s114
      %p123 = scmp.eq.s32.totalorder %s19, 0
      %p124 = por %p122, %p123
      %p125 = scmp.ne.s32.totalorder %s113, %s114
      %p126 = scmp.eq.s32.totalorder %s20, 1
      %p127 = por %p125, %p126
      %p129 = scmp.ne.s32.totalorder %s114, %s128
      %p130 = scmp.eq.s32.totalorder %s20, 0
      %p131 = por %p129, %p130
      %s132 = ssub.s32 %s14, %s21
      %p133 = scmp.eq.s32.totalorder %s132, 0
      %s135 = sadd.s32 %s134, 1
      %s136 = scalar_select %p133, %s134, %s135
      %p139 = pneg %p133
      %p140 = scmp.eq.s32.totalorder %s14, 1
      %p141 = por %p139, %p140
      %p142 = scmp.ne.s32.totalorder %s134, %s137
      %p143 = scmp.eq.s32.totalorder %s14, 0
      %p144 = por %p142, %p143
      %p145 = scmp.ne.s32.totalorder %s134, %s137
      %p146 = scmp.eq.s32.totalorder %s19, 1
      %p147 = por %p145, %p146
      %p148 = scmp.ne.s32.totalorder %s137, %s138
      %p149 = scmp.eq.s32.totalorder %s19, 0
      %p150 = por %p148, %p149
      %p151 = scmp.ne.s32.totalorder %s137, %s138
      %p152 = scmp.eq.s32.totalorder %s20, 1
      %p153 = por %p151, %p152
      %p155 = scmp.ne.s32.totalorder %s138, %s154
      %p156 = scmp.eq.s32.totalorder %s20, 0
      %p157 = por %p155, %p156
      %p158 = scmp.le.s32.totalorder 1, %s14
      %p159 = scmp.lt.s32.totalorder %s14, 3
      %p160 = pnand %p158, %p159
      %p161 = pneg %p160
      // Predicated region
      $region9: #{tpu_custom_call.1} parent=5 // pred_check
        _
      $region10: #{tpu_custom_call.1} parent=5 // pred_check_branch
        %163 = sbr.rel (%p160) target = $region12
      $region11: #{tpu_custom_call.1} parent=5 // pred_region
        %s164 = ssub.s32 %s14, 1
        // Predicated region
        $region13: #{tpu_custom_call.1} parent=11 // pred_check
          %p165 = pneg %p61
        $region14: #{tpu_custom_call.1} parent=11 // pred_check_branch
          %167 = sbr.rel (%p165) target = $region16
        $region15: #{tpu_custom_call.1} parent=11 // pred_region
          _
        $region16: #{tpu_custom_call.1} parent=11 // pred_fallthru
          _
        // Predicated region
        $region17: #{tpu_custom_call.1} parent=11 // pred_check
          %p168 = pneg %p82
        $region18: #{tpu_custom_call.1} parent=11 // pred_check_branch
          %170 = sbr.rel (%p168) target = $region20
        $region19: #{tpu_custom_call.1} parent=11 // pred_region
          _
        $region20: #{tpu_custom_call.1} parent=11 // pred_fallthru
          _
        // Predicated region
        $region21: #{tpu_custom_call.1} parent=11 // pred_check
          %p171 = pneg %p103
        $region22: #{tpu_custom_call.1} parent=11 // pred_check_branch
          %173 = sbr.rel (%p171) target = $region24
        $region23: #{tpu_custom_call.1} parent=11 // pred_region
          _
        $region24: #{tpu_custom_call.1} parent=11 // pred_fallthru
          _
        // Predicated region
        $region25: #{tpu_custom_call.1} parent=11 // pred_check
          %p174 = pneg %p124
        $region26: #{tpu_custom_call.1} parent=11 // pred_check_branch
          %176 = sbr.rel (%p174) target = $region28
        $region27: #{tpu_custom_call.1} parent=11 // pred_region
          _
        $region28: #{tpu_custom_call.1} parent=11 // pred_fallthru
          _
      $region12: #{tpu_custom_call.1} parent=5 // pred_fallthru
        _
      %p177 = scmp.lt.s32.totalorder %s14, 2
      // Predicated region
      $region29: #{tpu_custom_call.1} parent=5 // pred_check
        %p178 = pneg %p177
      $region30: #{tpu_custom_call.1} parent=5 // pred_check_branch
        %180 = sbr.rel (%p178) target = $region32
      $region31: #{tpu_custom_call.1} parent=5 // pred_region
        // Predicated region
        $region33: #{tpu_custom_call.1} parent=31 // pred_check
          %p181 = pneg %p34
        $region34: #{tpu_custom_call.1} parent=31 // pred_check_branch
          %183 = sbr.rel (%p181) target = $region36
        $region35: #{tpu_custom_call.1} parent=31 // pred_region
          %p184 = scmp.lt.s32.totalorder %s14, 1
          %s185 = scalar_select %p184, %s14, 1
          %s186 = smul.addr %s185, 8
          %s187 = scalar_lea.vmem %s0, %s186
        $region36: #{tpu_custom_call.1} parent=31 // pred_fallthru
          _
      $region32: #{tpu_custom_call.1} parent=5 // pred_fallthru
        _
      %p188 = scmp.le.s32.totalorder 1, %s14
      %p189 = scmp.lt.s32.totalorder %s14, 3
      %p190 = pnand %p188, %p189
      %p191 = pneg %p190
      // Predicated region
      $region37: #{tpu_custom_call.1} parent=5 // pred_check
        _
      $region38: #{tpu_custom_call.1} parent=5 // pred_check_branch
        %193 = sbr.rel (%p190) target = $region40
      $region39: #{tpu_custom_call.1} parent=5 // pred_region
        %s194 = ssub.s32 %s14, 1
        %p195 = scmp.lt.s32.totalorder %s19, 1
        %s196 = scalar_select %p195, %s19, 1
        %s197 = smul.addr %s196, 8
        %s198 = scalar_lea.vmem %s0, %s197
        %p199 = pneg %p40
        %p200 = pneg %p37
        %p201 = pneg %p61
        %p202 = pneg %p58
        %p203 = pneg %p82
        %p204 = pneg %p79
        %p205 = pneg %p103
        %p206 = pneg %p100
        %p207 = pneg %p124
        %p208 = pneg %p121
        %p209 = pneg %p150
        %p210 = pneg %p147
        %s211 = sand.u32 %s137, 1
        %s212 = scalar_lea.sflag [#allocation3], %s211
        %s213 = sand.u32 %s137, 1
        %s214 = smul.addr %s213, 8
        %s215 = scalar_lea.vmem [#allocation2], %s214
        %p216 = scmp.lt.s32.totalorder %s19, 1
        %s217 = scalar_select %p216, %s19, 1
        %s218 = smul.addr %s217, 8
        %s219 = scalar_lea.vmem %s0, %s218
        %v221 = vld [vmem:[%s219] sm:$0xff]
        %v222 = vld [vmem:[%s2] sm:$0x1]
        %v223 = vld [vmem:[%s3] sm:$0x1]
        %v224 = vld [vmem:[%s4] sm:$0x1]
        %v225 = vld [vmem:[%s1] sm:$0x3]
        %v226 = vpack.c.bf16 %v221, %v221
        %vm227 = vcmask 31744
        %v229 = vsel %vm227, %v226, 0
        %vm231 = vcmask 1041408
        %v233 = vsel %vm231, %v225, 0
        %235 = vmatpush.bf16.msra.mxu0 0
        %236 = vmatpush.bf16.msra.mxu0 0
        %237 = vmatpush.bf16.msra.mxu0 0
        %238 = vmatpush.bf16.msra.mxu0 0
        %239 = vmatpush.bf16.msra.mxu0 0
        %240 = vmatpush.bf16.msra.mxu0 0
        %241 = vmatpush.bf16.msra.mxu0 0
        %242 = vmatpush.bf16.msra.mxu0 %v233
        %243 = vmatmul.bf16.gmra.mxu0 %v229
        %v244 = vpop.f32.mrf.mxu0
        %v245 = vadd.f32 0.0, %v244
        %v246 = vpop.f32.mrf.mxu0
        %247 = vdwg.mxu0
        %v248 = vlaneseq
        %v249 = vshrl.u32 %v248, 7
        %vm250 = vcmp.gt.s32.totalorder %v249, 0
        %v251 = vrot.slane %v245, 7
        %v252 = vsel %vm250, %v251, 0.0
        %vm253 = vcmp.lt.s32.totalorder %v249, 7
        %255 = vrot.lane.b32.xlu0 %v245, 64
        %v256 = vpop.permute.xlu0 %255
        %v258 = vrot.slane %v256, 1
        %v259 = vsel %vm253, %v258, 0.0
        %261 = vrot.lane.b32.xlu0 %v252, 32
        %v262 = vpop.permute.xlu0 %261
        %v264 = vadd.f32 %v245, %v262
        %266 = vrot.lane.b32.xlu0 %v259, 32
        %v267 = vpop.permute.xlu0 %266
        %v269 = vadd.f32 %v264, %v267
        %v271 = vperm.slane %v222, 0
        %272 = vrot.lane.b32.xlu0 %v271, 32
        %v273 = vpop.permute.xlu0 %272
        %v275 = vadd.f32 %v269, %v273
        %277 = vrot.lane.b32.xlu0 %v275, 96
        %v278 = vpop.permute.xlu0 %277
        %vm280 = vcmask 64512
        %v281 = vsel %vm280, %v278, 0.0
        %282 = vadd.xlane.f32.xlu0 %v281
        %v283 = vpop.xlane.xlu0 %282
        %v284 = vrot.slane %v283, 4
        %v285 = vadd.f32 %v283, %v284
        %v286 = vrot.slane %v285, 2
        %v287 = vadd.f32 %v285, %v286
        %v288 = vrot.slane %v287, 1
        %v289 = vadd.f32 %v287, %v288
        %s290 = vtos %v289
        %v291 = vstv %s290
        %v292 = vrcp.pop 64.0
        %v293 = vmul.f32 64.0, %v292
        %v294 = vsub.f32 1.0, %v293
        %v295 = vmul.f32 %v292, %v294
        %v296 = vadd.f32 %v292, %v295
        %vm297 = vweird.f32 %v292
        %v298 = vsel %vm297, %v292, %v296
        %v299 = vmul.f32 %v291, %v298
        %v300 = vsub.f32 %v275, %v299
        %v301 = vmul.f32 %v300, %v300
        %303 = vrot.lane.b32.xlu0 %v301, 96
        %v304 = vpop.permute.xlu0 %303
        %v306 = vsel %vm280, %v304, 0.0
        %307 = vadd.xlane.f32.xlu0 %v306
        %v308 = vpop.xlane.xlu0 %307
        %v309 = vrot.slane %v308, 4
        %v310 = vadd.f32 %v308, %v309
        %v311 = vrot.slane %v310, 2
        %v312 = vadd.f32 %v310, %v311
        %v313 = vrot.slane %v312, 1
        %v314 = vadd.f32 %v312, %v313
        %s315 = vtos %v314
        %v316 = vstv %s315
        %v317 = vmul.f32 %v316, %v298
        %v318 = vadd.f32 %v317, 1e-05
        %v319 = vrsqrt.pop %v318
        %v320 = vmul.f32 %v319, %v318
        %v321 = vmul.f32 %v320, %v319
        %v322 = vmul.f32 0.5, %v321
        %v323 = vsub.f32 1.5, %v322
        %v324 = vmul.f32 %v319, %v323
        %vm325 = vweird.f32 %v318
        %vm326 = vweird.f32 %v319
        %vm327 = vmor %vm325, %vm326
        %v328 = vsel %vm327, %v319, %v324
        %v329 = vmul.f32 %v300, %v328
        %v331 = vperm.slane %v223, 0
        %332 = vrot.lane.b32.xlu0 %v331, 32
        %v333 = vpop.permute.xlu0 %332
        %v335 = vmul.f32 %v329, %v333
        %v337 = vperm.slane %v224, 0
        %338 = vrot.lane.b32.xlu0 %v337, 32
        %v339 = vpop.permute.xlu0 %338
        %v341 = vadd.f32 %v335, %v339
        %vm342 = vcmp.ge.f32.partialorder %v341, 0.0
        %v343 = vmul.f32 %v341, 0.01
        %v344 = vsel %vm342, %v341, %v343
        %346 = vrot.lane.b32.xlu0 %v344, 96
        %v347 = vpop.permute.xlu0 %346
        %349 = vst.msk [vmem:[%s215] sm:$0xff] %vm280, %v347
        %350 = vrot.lane.b32.xlu0 %v275, 88
        %v351 = vpop.permute.xlu0 %350
        %v353 = vsel %vm280, %v351, 0.0
        %354 = vadd.xlane.f32.xlu0 %v353
        %v355 = vpop.xlane.xlu0 %354
        %v356 = vrot.slane %v355, 4
        %v357 = vadd.f32 %v355, %v356
        %v358 = vrot.slane %v357, 2
        %v359 = vadd.f32 %v357, %v358
        %v360 = vrot.slane %v359, 1
        %v361 = vadd.f32 %v359, %v360
        %s362 = vtos %v361
        %v363 = vstv %s362
        %v364 = vmul.f32 %v363, %v298
        %v365 = vsub.f32 %v275, %v364
        %v366 = vmul.f32 %v365, %v365
        %368 = vrot.lane.b32.xlu0 %v366, 88
        %v369 = vpop.permute.xlu0 %368
        %v371 = vsel %vm280, %v369, 0.0
        %372 = vadd.xlane.f32.xlu0 %v371
        %v373 = vpop.xlane.xlu0 %372
        %v374 = vrot.slane %v373, 4
        %v375 = vadd.f32 %v373, %v374
        %v376 = vrot.slane %v375, 2
        %v377 = vadd.f32 %v375, %v376
        %v378 = vrot.slane %v377, 1
        %v379 = vadd.f32 %v377, %v378
        %s380 = vtos %v379
        %v381 = vstv %s380
        %v382 = vmul.f32 %v381, %v298
        %v383 = vadd.f32 %v382, 1e-05
        %v384 = vrsqrt.pop %v383
        %v385 = vmul.f32 %v384, %v383
        %v386 = vmul.f32 %v385, %v384
        %v387 = vmul.f32 0.5, %v386
        %v388 = vsub.f32 1.5, %v387
        %v389 = vmul.f32 %v384, %v388
        %vm390 = vweird.f32 %v383
        %vm391 = vweird.f32 %v384
        %vm392 = vmor %vm390, %vm391
        %v393 = vsel %vm392, %v384, %v389
        %v394 = vmul.f32 %v365, %v393
        %v395 = vmul.f32 %v394, %v333
        %v396 = vadd.f32 %v395, %v339
        %vm397 = vcmp.ge.f32.partialorder %v396, 0.0
        %v398 = vmul.f32 %v396, 0.01
        %v399 = vsel %vm397, %v396, %v398
        %401 = vrot.lane.b32.xlu0 %v399, 96
        %v402 = vpop.permute.xlu0 %401
        %vm404 = vcmask 130112
        %405 = vst.msk [vmem:[%s215] sm:$0xff] %vm404, %v402
        %406 = vrot.lane.b32.xlu0 %v275, 80
        %v407 = vpop.permute.xlu0 %406
        %v409 = vsel %vm280, %v407, 0.0
        %410 = vadd.xlane.f32.xlu0 %v409
        %v411 = vpop.xlane.xlu0 %410
        %v412 = vrot.slane %v411, 4
        %v413 = vadd.f32 %v411, %v412
        %v414 = vrot.slane %v413, 2
        %v415 = vadd.f32 %v413, %v414
        %v416 = vrot.slane %v415, 1
        %v417 = vadd.f32 %v415, %v416
        %s418 = vtos %v417
        %v419 = vstv %s418
        %v420 = vmul.f32 %v419, %v298
        %v421 = vsub.f32 %v275, %v420
        %v422 = vmul.f32 %v421, %v421
        %424 = vrot.lane.b32.xlu0 %v422, 80
        %v425 = vpop.permute.xlu0 %424
        %v427 = vsel %vm280, %v425, 0.0
        %428 = vadd.xlane.f32.xlu0 %v427
        %v429 = vpop.xlane.xlu0 %428
        %v430 = vrot.slane %v429, 4
        %v431 = vadd.f32 %v429, %v430
        %v432 = vrot.slane %v431, 2
        %v433 = vadd.f32 %v431, %v432
        %v434 = vrot.slane %v433, 1
        %v435 = vadd.f32 %v433, %v434
        %s436 = vtos %v435
        %v437 = vstv %s436
        %v438 = vmul.f32 %v437, %v298
        %v439 = vadd.f32 %v438, 1e-05
        %v440 = vrsqrt.pop %v439
        %v441 = vmul.f32 %v440, %v439
        %v442 = vmul.f32 %v441, %v440
        %v443 = vmul.f32 0.5, %v442
        %v444 = vsub.f32 1.5, %v443
        %v445 = vmul.f32 %v440, %v444
        %vm446 = vweird.f32 %v439
        %vm447 = vweird.f32 %v440
        %vm448 = vmor %vm446, %vm447
        %v449 = vsel %vm448, %v440, %v445
        %v450 = vmul.f32 %v421, %v449
        %v451 = vmul.f32 %v450, %v333
        %v452 = vadd.f32 %v451, %v339
        %vm453 = vcmp.ge.f32.partialorder %v452, 0.0
        %v454 = vmul.f32 %v452, 0.01
        %v455 = vsel %vm453, %v452, %v454
        %457 = vrot.lane.b32.xlu0 %v455, 96
        %v458 = vpop.permute.xlu0 %457
        %vm460 = vcmask 195712
        %461 = vst.msk [vmem:[%s215] sm:$0xff] %vm460, %v458
        %462 = vrot.lane.b32.xlu0 %v275, 72
        %v463 = vpop.permute.xlu0 %462
        %v465 = vsel %vm280, %v463, 0.0
        %466 = vadd.xlane.f32.xlu0 %v465
        %v467 = vpop.xlane.xlu0 %466
        %v468 = vrot.slane %v467, 4
        %v469 = vadd.f32 %v467, %v468
        %v470 = vrot.slane %v469, 2
        %v471 = vadd.f32 %v469, %v470
        %v472 = vrot.slane %v471, 1
        %v473 = vadd.f32 %v471, %v472
        %s474 = vtos %v473
        %v475 = vstv %s474
        %v476 = vmul.f32 %v475, %v298
        %v477 = vsub.f32 %v275, %v476
        %v478 = vmul.f32 %v477, %v477
        %480 = vrot.lane.b32.xlu0 %v478, 72
        %v481 = vpop.permute.xlu0 %480
        %v483 = vsel %vm280, %v481, 0.0
        %484 = vadd.xlane.f32.xlu0 %v483
        %v485 = vpop.xlane.xlu0 %484
        %v486 = vrot.slane %v485, 4
        %v487 = vadd.f32 %v485, %v486
        %v488 = vrot.slane %v487, 2
        %v489 = vadd.f32 %v487, %v488
        %v490 = vrot.slane %v489, 1
        %v491 = vadd.f32 %v489, %v490
        %s492 = vtos %v491
        %v493 = vstv %s492
        %v494 = vmul.f32 %v493, %v298
        %v495 = vadd.f32 %v494, 1e-05
        %v496 = vrsqrt.pop %v495
        %v497 = vmul.f32 %v496, %v495
        %v498 = vmul.f32 %v497, %v496
        %v499 = vmul.f32 0.5, %v498
        %v500 = vsub.f32 1.5, %v499
        %v501 = vmul.f32 %v496, %v500
        %vm502 = vweird.f32 %v495
        %vm503 = vweird.f32 %v496
        %vm504 = vmor %vm502, %vm503
        %v505 = vsel %vm504, %v496, %v501
        %v506 = vmul.f32 %v477, %v505
        %v507 = vmul.f32 %v506, %v333
        %v508 = vadd.f32 %v507, %v339
        %vm509 = vcmp.ge.f32.partialorder %v508, 0.0
        %v510 = vmul.f32 %v508, 0.01
        %v511 = vsel %vm509, %v508, %v510
        %513 = vrot.lane.b32.xlu0 %v511, 96
        %v514 = vpop.permute.xlu0 %513
        %vm516 = vcmask 261312
        %517 = vst.msk [vmem:[%s215] sm:$0xff] %vm516, %v514
        %s518 = sand.u32 %s137, 1
        %s519 = scalar_lea.sflag [#allocation3], %s518
        %s520 = sand.u32 %s137, 1
        %s521 = smul.addr %s520, 8
        %s522 = scalar_lea.vmem [#allocation2], %s521
        // Predicated region
        $region41: #{tpu_custom_call.1} parent=39 // pred_check
          %p523 = pneg %p147
        $region42: #{tpu_custom_call.1} parent=39 // pred_check_branch
          %525 = sbr.rel (%p523) target = $region44
        $region43: #{tpu_custom_call.1} parent=39 // pred_region
          %527 = vsyncadd %s519, 0
          %s528 = smul.addr %s19, 8
          %s529 = scalar_lea.hbm %s5, %s528
          %s531 = sshll.u32 %s522, 4
          %s532 = int_to_ptr.vmem [resolvable:$true] %s531
          %s533 = sshll.u32 %s529, 4
          %s534 = int_to_ptr.hbm [resolvable:$true] %s533
          %536 = dma.vmem_to_hbm [thread:$0]  %s532, 128, %s534, %s519
        $region44: #{tpu_custom_call.1} parent=39 // pred_fallthru
          _
      $region40: #{tpu_custom_call.1} parent=5 // pred_fallthru
        _
      %p537 = scmp.le.s32.totalorder 2, %s14
      // Predicated region
      $region45: #{tpu_custom_call.1} parent=5 // pred_check
        %p538 = pneg %p537
      $region46: #{tpu_custom_call.1} parent=5 // pred_check_branch
        %540 = sbr.rel (%p538) target = $region48
      $region47: #{tpu_custom_call.1} parent=5 // pred_region
        %s541 = ssub.s32 %s14, 2
        // Predicated region
        $region49: #{tpu_custom_call.1} parent=47 // pred_check
          %p542 = pneg %p153
        $region50: #{tpu_custom_call.1} parent=47 // pred_check_branch
          %544 = sbr.rel (%p542) target = $region52
        $region51: #{tpu_custom_call.1} parent=47 // pred_region
          %s545 = sand.u32 %s138, 1
          %s546 = scalar_lea.sflag [#allocation3], %s545
          %s547 = sand.u32 %s138, 1
          %s548 = smul.addr %s547, 8
          %s549 = scalar_lea.vmem [#allocation2], %s548
          %551 = dma.done %s546, 128
        $region52: #{tpu_custom_call.1} parent=47 // pred_fallthru
          _
      $region48: #{tpu_custom_call.1} parent=5 // pred_fallthru
        _
    $region6: #{tpu_custom_call.1} parent=1 // loop_footer
      %s18 = sadd.s32 1, %s14
    $region7: #{tpu_custom_call.1} parent=1 // loop_footer_branch
      %13 = sbr.rel target = $region3
    $region8: #{tpu_custom_call.1} parent=1 // loop_exit
      _
    %552 = vsyncpa [#allocation3], 1
    %s553 = scalar_lea.sflag [#allocation3], 1
    %554 = vsyncpa %s553, 1

</llo_original>
